<compile_context>
chip_gen: v7x
topology: tpu7x:2x2x1
jax: 0.10.0
libtpu: 0.0.40
codegen_flags: <defaults>
</compile_context>

<pallas_src>
import functools

import jax
import jax.numpy as jnp
from jax.experimental import pallas as pl
from jax.experimental.pallas import tpu as pltpu


def _round_up(x, m):
    return (x + m - 1) // m * m


def _sublane(dtype):
    return {4: 8, 2: 16, 1: 32}[jnp.dtype(dtype).itemsize]


def _choose_tile(dim, t_max, align):
    """Balanced ragged tiling: pick the tile count first, then the tile size."""
    d = _round_up(dim, align)
    if d <= t_max:
        return d, d                     # single tile covering the padded dim
    n = -(-d // t_max)                  # number of tiles
    t = _round_up(-(-d // n), align)    # balanced tile size
    n = -(-d // t)
    return t, t * n


def _pathed_linear_kernel(x_ref, wl_ref, ws_ref, bl_ref, bsn_ref,
                          o_ref, acc_y, acc_s):
    """Grid = (M_tiles, N_tiles, K_tiles); K (axis 2) is the reduction axis.

    x_ref:   (tm, tk)  activation tile (compute dtype)
    wl_ref:  (tk, tn)  wrapped-layer weight tile
    ws_ref:  (tk, tn)  path-selector weight tile
    bl_ref:  (1, tn)   layer bias (f32)
    bsn_ref: (1, tn)   NEGATED selector bias (f32)
    o_ref:   (tm, tn)  output tile
    acc_*:   (tm, tn)  f32 accumulator scratch (layer / selector)
    """
    k = pl.program_id(2)

    # Two MXU dots sharing the same LHS tile (no fused-weight copy needed).
    y = jnp.dot(x_ref[...], wl_ref[...], preferred_element_type=jnp.float32)
    s = jnp.dot(x_ref[...], ws_ref[...], preferred_element_type=jnp.float32)

    @pl.when(k == 0)
    def _first():           # direct write: saves the zero store + reload
        acc_y[...] = y
        acc_s[...] = s

    @pl.when(k != 0)
    def _accumulate():
        acc_y[...] += y
        acc_s[...] += s

    @pl.when(k == pl.num_programs(2) - 1)
    def _finalize():
        # path = relu(selector(X)); path[path != 0] = 1   <=>   selector(X) > 0
        #   selector(X) = acc_s + b_sel > 0   <=>   acc_s > -b_sel
        mask = acc_s[...] > bsn_ref[...]
        out = acc_y[...] + bl_ref[...]          # layer bias added exactly once
        o_ref[...] = jnp.where(mask, out, 0.0).astype(o_ref.dtype)


@functools.partial(jax.jit,
                   static_argnames=("tm_max", "tn_max", "tk_max",
                                    "compute_dtype"))
def pathed_linear(x, w_layer, b_layer, w_sel, b_sel, *,
                  tm_max=512, tn_max=512, tk_max=1024,
                  compute_dtype=jnp.bfloat16):
    """x: [M, K]; w_*: [K, N]; b_*: [N]. Returns [M, N] in x.dtype.

    Pass weights already in `compute_dtype` (default bf16) to avoid an extra
    cast pass over HBM inside the jitted call.  The binary path mask is only
    approximate near zero under reduced-precision compute.
    """
    M, K = x.shape
    N = w_layer.shape[1]
    out_dtype = x.dtype
    cdt = jnp.dtype(x.dtype if compute_dtype is None else compute_dtype)

    if x.dtype != cdt:
        x = x.astype(cdt)
    if w_layer.dtype != cdt:
        w_layer = w_layer.astype(cdt)
    if w_sel.dtype != cdt:
        w_sel = w_sel.astype(cdt)

    # --- balanced, alignment-legal tiling ----------------------------------
    m_align = max(_sublane(cdt), _sublane(out_dtype))
    tm, M_pad = _choose_tile(M, tm_max, m_align)
    tn, N_pad = _choose_tile(N, tn_max, 128)
    tk, K_pad = _choose_tile(K, tk_max, 128)

    # v7x megacore: make sure the (i, j) parallel grid has >= 2 blocks when
    # the problem is big enough to split.
    if (M_pad // tm) * (N_pad // tn) == 1:
        if M_pad >= 2 * m_align:
            tm = _round_up(-(-M_pad // 2), m_align)
            M_pad = 2 * tm
        elif N_pad >= 256:
            tn = _round_up(-(-N_pad // 2), 128)
            N_pad = 2 * tn

    # --- pad operands (zero padding is neutral for the matmul and the mask) -
    if (M_pad, K_pad) != (M, K):
        x = jnp.pad(x, ((0, M_pad - M), (0, K_pad - K)))
    if (K_pad, N_pad) != (K, N):
        w_layer = jnp.pad(w_layer, ((0, K_pad - K), (0, N_pad - N)))
        w_sel = jnp.pad(w_sel, ((0, K_pad - K), (0, N_pad - N)))
    bl = jnp.pad(b_layer.astype(jnp.float32), (0, N_pad - N)).reshape(1, N_pad)
    bsn = jnp.pad(-b_sel.astype(jnp.float32), (0, N_pad - N)).reshape(1, N_pad)

    grid = (M_pad // tm, N_pad // tn, K_pad // tk)

    # --- VMEM budget: double-buffered I/O + two f32 accumulators ------------
    csz = cdt.itemsize
    osz = jnp.dtype(out_dtype).itemsize
    vmem_bytes = (2 * (tm * tk + 2 * tk * tn) * csz   # x + both weight tiles
                  + 2 * 2 * tn * 4                    # bias rows
                  + 2 * tm * tn * osz                 # output tile
                  + 2 * tm * tn * 4)                  # accumulators
    vmem_limit = int(min(max(vmem_bytes + (8 << 20), 32 << 20), 64 << 20))

    out = pl.pallas_call(
        _pathed_linear_kernel,
        out_shape=jax.ShapeDtypeStruct((M_pad, N_pad), out_dtype),
        grid_spec=pltpu.PrefetchScalarGridSpec(
            num_scalar_prefetch=0,
            grid=grid,
            in_specs=[
                pl.BlockSpec((tm, tk), lambda i, j, k: (i, k)),
                pl.BlockSpec((tk, tn), lambda i, j, k: (k, j)),
                pl.BlockSpec((tk, tn), lambda i, j, k: (k, j)),
                pl.BlockSpec((1, tn), lambda i, j, k: (0, j)),
                pl.BlockSpec((1, tn), lambda i, j, k: (0, j)),
            ],
            out_specs=pl.BlockSpec((tm, tn), lambda i, j, k: (i, j)),
            scratch_shapes=[pltpu.VMEM((tm, tn), jnp.float32),
                            pltpu.VMEM((tm, tn), jnp.float32)],
        ),
        compiler_params=pltpu.CompilerParams(
            dimension_semantics=("parallel", "parallel", "arbitrary"),
            vmem_limit_bytes=vmem_limit),
    )(x, w_layer, w_sel, bl, bsn)

    if (M_pad, N_pad) != (M, N):
        out = out[:M, :N]
    return out


def pathed_linear_ref(x, w_layer, b_layer, w_sel, b_sel, compute_dtype=None):
    """Pure-JAX reference. Returns (output, selector_pre_activation)."""
    xc, wlc, wsc = x, w_layer, w_sel
    if compute_dtype is not None:
        xc = xc.astype(compute_dtype)
        wlc = wlc.astype(compute_dtype)
        wsc = wsc.astype(compute_dtype)
    y = jnp.dot(xc, wlc, preferred_element_type=jnp.float32) + b_layer[None, :]
    s = jnp.dot(xc, wsc, preferred_element_type=jnp.float32) + b_sel[None, :]
    out = jnp.where(s > 0.0, y, 0.0).astype(x.dtype)
    return out, s


def _check(out, ref, s_ref, name, atol, boundary):
    # Ignore elements where the selector pre-activation sits on the mask
    # decision boundary (sign can legitimately flip under reordered / reduced
    # precision accumulation).
    safe = jnp.abs(s_ref) > boundary
    err = float(jnp.max(jnp.where(safe, jnp.abs(out.astype(jnp.float32)
                                                - ref.astype(jnp.float32)), 0.0)))
    assert err < atol, f"{name}: max abs err {err} >= {atol}"


if __name__ == "__main__":
    key = jax.random.PRNGKey(0)

    # ---- Test 1: small, faithful to the module (selector = deepcopy(layer)),
    #      exact f32 compute ------------------------------------------------
    batch, in_feat, out_feat = 8, 32, 32
    kx, kw, kb = jax.random.split(key, 3)
    x = jax.random.normal(kx, (batch, in_feat), dtype=jnp.float32)
    bound = 1.0 / jnp.sqrt(jnp.float32(in_feat))
    w_layer = jax.random.uniform(kw, (in_feat, out_feat), jnp.float32, -bound, bound)
    b_layer = jax.random.uniform(kb, (out_feat,), jnp.float32, -bound, bound)
    w_sel = w_layer.copy()          # copy.deepcopy(layer) at init
    b_sel = b_layer.copy()

    out1 = jax.block_until_ready(
        pathed_linear(x, w_layer, b_layer, w_sel, b_sel,
                      compute_dtype=jnp.float32))
    ref1, s1 = pathed_linear_ref(x, w_layer, b_layer, w_sel, b_sel)
    _check(out1, ref1, s1, "small_f32", atol=1e-3, boundary=1e-4)

    # ---- Test 2: ragged multi-tile grid (M/N/K all tiled, K reduction loop),
    #      bf16 compute, distinct selector weights ---------------------------
    M2, K2, N2 = 300, 640, 384
    k1, k2, k3, k4, k5 = jax.random.split(jax.random.PRNGKey(1), 5)
    x2 = jax.random.normal(k1, (M2, K2), dtype=jnp.float32)
    bound2 = 1.0 / jnp.sqrt(jnp.float32(K2))
    wl2 = jax.random.uniform(k2, (K2, N2), jnp.float32, -bound2, bound2)
    bl2 = jax.random.uniform(k3, (N2,), jnp.float32, -bound2, bound2)
    ws2 = jax.random.uniform(k4, (K2, N2), jnp.float32, -bound2, bound2)
    bs2 = jax.random.uniform(k5, (N2,), jnp.float32, -bound2, bound2)

    out2 = jax.block_until_ready(
        pathed_linear(x2, wl2, bl2, ws2, bs2,
                      tm_max=128, tn_max=128, tk_max=256,
                      compute_dtype=jnp.bfloat16))
    ref2, s2 = pathed_linear_ref(x2, wl2, bl2, ws2, bs2,
                                 compute_dtype=jnp.bfloat16)
    _check(out2, ref2, s2, "tiled_bf16", atol=5e-2, boundary=5e-3)

    # ---- Test 3: default tiles (single M/N tile -> megacore split path),
    #      weights pre-cast to bf16 as recommended ---------------------------
    wl2b, ws2b = wl2.astype(jnp.bfloat16), ws2.astype(jnp.bfloat16)
    out3 = jax.block_until_ready(
        pathed_linear(x2, wl2b, bl2, ws2b, bs2))
    ref3, s3 = pathed_linear_ref(x2, wl2b, bl2, ws2b, bs2,
                                 compute_dtype=jnp.bfloat16)
    _check(out3, ref3, s3, "default_bf16", atol=5e-2, boundary=5e-3)

    print("KERNEL_OK")
</pallas_src>

<mosaic_0001>
module attributes {stable_mosaic.version = 11 : i64} {
  func.func @_pathed_linear_kernel(%arg0: i32, %arg1: i32, %arg2: i32, %arg3: memref<8x128xf32, #tpu.memory_space<vmem>>, %arg4: memref<128x128xf32, #tpu.memory_space<vmem>>, %arg5: memref<128x128xf32, #tpu.memory_space<vmem>>, %arg6: memref<1x128xf32, #tpu.memory_space<vmem>>, %arg7: memref<1x128xf32, #tpu.memory_space<vmem>>, %arg8: memref<8x128xf32, #tpu.memory_space<vmem>>, %arg9: memref<8x128xf32, #tpu.memory_space<vmem>>, %arg10: memref<8x128xf32, #tpu.memory_space<vmem>>) attributes {dimension_semantics = [#tpu.dimension_semantics<parallel>, #tpu.dimension_semantics<parallel>, #tpu.dimension_semantics<arbitrary>], iteration_bounds = array<i64: 1, 1, 1>, scalar_prefetch = 0 : i64, scratch_operands = 2 : i64, tpu.core_type = #tpu.core_type<tc>, window_params = [{transform_indices = @transform_0, window_bounds = array<i64: 8, 128>}, {transform_indices = @transform_1, window_bounds = array<i64: 128, 128>}, {transform_indices = @transform_2, window_bounds = array<i64: 128, 128>}, {transform_indices = @transform_3, window_bounds = array<i64: 1, 128>}, {transform_indices = @transform_4, window_bounds = array<i64: 1, 128>}, {transform_indices = @transform_5, window_bounds = array<i64: 8, 128>}]} {
    %c0 = arith.constant 0 : index
    %c0_0 = arith.constant 0 : index
    %0 = vector.load %arg3[%c0, %c0_0] : memref<8x128xf32, #tpu.memory_space<vmem>>, vector<8x128xf32>
    %c0_1 = arith.constant 0 : index
    %c0_2 = arith.constant 0 : index
    %1 = vector.load %arg4[%c0_1, %c0_2] : memref<128x128xf32, #tpu.memory_space<vmem>>, vector<128x128xf32>
    %cst = arith.constant dense<0.000000e+00> : vector<8x128xf32>
    %2 = tpu.matmul %0, %1, %cst {dimension_numbers = #tpu.dot_dimension_numbers<[1], [0], [0], [1], [0, 0, 1, 1], [], []>} : vector<8x128xf32>, vector<128x128xf32>, vector<8x128xf32> -> vector<8x128xf32>
    %c0_3 = arith.constant 0 : index
    %c0_4 = arith.constant 0 : index
    %3 = vector.load %arg3[%c0_3, %c0_4] : memref<8x128xf32, #tpu.memory_space<vmem>>, vector<8x128xf32>
    %c0_5 = arith.constant 0 : index
    %c0_6 = arith.constant 0 : index
    %4 = vector.load %arg5[%c0_5, %c0_6] : memref<128x128xf32, #tpu.memory_space<vmem>>, vector<128x128xf32>
    %cst_7 = arith.constant dense<0.000000e+00> : vector<8x128xf32>
    %5 = tpu.matmul %3, %4, %cst_7 {dimension_numbers = #tpu.dot_dimension_numbers<[1], [0], [0], [1], [0, 0, 1, 1], [], []>} : vector<8x128xf32>, vector<128x128xf32>, vector<8x128xf32> -> vector<8x128xf32>
    %c0_i32 = arith.constant 0 : i32
    %6 = arith.cmpi eq, %arg2, %c0_i32 : i32
    %7 = arith.extui %6 : i1 to i32
    %c0_i32_8 = arith.constant 0 : i32
    %8 = arith.cmpi ne, %7, %c0_i32_8 : i32
    scf.if %8 {
      %c0_13 = arith.constant 0 : index
      %c0_14 = arith.constant 0 : index
      %15 = vector.load %arg9[%c0_13, %c0_14] : memref<8x128xf32, #tpu.memory_space<vmem>>, vector<8x128xf32>
      tpu.vector_store %arg9[%c0_13, %c0_14], %2 {strides = array<i32>} : memref<8x128xf32, #tpu.memory_space<vmem>>, vector<8x128xf32>,
      %c0_15 = arith.constant 0 : index
      %c0_16 = arith.constant 0 : index
      %16 = vector.load %arg10[%c0_15, %c0_16] : memref<8x128xf32, #tpu.memory_space<vmem>>, vector<8x128xf32>
      tpu.vector_store %arg10[%c0_15, %c0_16], %5 {strides = array<i32>} : memref<8x128xf32, #tpu.memory_space<vmem>>, vector<8x128xf32>,
    } else {
    }
    %c0_i32_9 = arith.constant 0 : i32
    %9 = arith.cmpi ne, %arg2, %c0_i32_9 : i32
    %10 = arith.extui %9 : i1 to i32
    %c0_i32_10 = arith.constant 0 : i32
    %11 = arith.cmpi ne, %10, %c0_i32_10 : i32
    scf.if %11 {
      %c0_13 = arith.constant 0 : index
      %c0_14 = arith.constant 0 : index
      %15 = vector.load %arg9[%c0_13, %c0_14] : memref<8x128xf32, #tpu.memory_space<vmem>>, vector<8x128xf32>
      %16 = arith.addf %15, %2 : vector<8x128xf32>
      %c0_15 = arith.constant 0 : index
      %c0_16 = arith.constant 0 : index
      %17 = vector.load %arg9[%c0_15, %c0_16] : memref<8x128xf32, #tpu.memory_space<vmem>>, vector<8x128xf32>
      tpu.vector_store %arg9[%c0_15, %c0_16], %16 {strides = array<i32>} : memref<8x128xf32, #tpu.memory_space<vmem>>, vector<8x128xf32>,
      %c0_17 = arith.constant 0 : index
      %c0_18 = arith.constant 0 : index
      %18 = vector.load %arg10[%c0_17, %c0_18] : memref<8x128xf32, #tpu.memory_space<vmem>>, vector<8x128xf32>
      %19 = arith.addf %18, %5 : vector<8x128xf32>
      %c0_19 = arith.constant 0 : index
      %c0_20 = arith.constant 0 : index
      %20 = vector.load %arg10[%c0_19, %c0_20] : memref<8x128xf32, #tpu.memory_space<vmem>>, vector<8x128xf32>
      tpu.vector_store %arg10[%c0_19, %c0_20], %19 {strides = array<i32>} : memref<8x128xf32, #tpu.memory_space<vmem>>, vector<8x128xf32>,
    } else {
    }
    %c0_i32_11 = arith.constant 0 : i32
    %12 = arith.cmpi eq, %arg2, %c0_i32_11 : i32
    %13 = arith.extui %12 : i1 to i32
    %c0_i32_12 = arith.constant 0 : i32
    %14 = arith.cmpi ne, %13, %c0_i32_12 : i32
    scf.if %14 {
      %c0_13 = arith.constant 0 : index
      %c0_14 = arith.constant 0 : index
      %15 = vector.load %arg10[%c0_13, %c0_14] : memref<8x128xf32, #tpu.memory_space<vmem>>, vector<8x128xf32>
      %c0_15 = arith.constant 0 : index
      %c0_16 = arith.constant 0 : index
      %16 = vector.load %arg7[%c0_15, %c0_16] : memref<1x128xf32, #tpu.memory_space<vmem>>, vector<1x128xf32>
      %17 = vector.broadcast %16 : vector<1x128xf32> to vector<8x128xf32>
      %18 = arith.cmpf ogt, %15, %17 : vector<8x128xf32>
      %c0_17 = arith.constant 0 : index
      %c0_18 = arith.constant 0 : index
      %19 = vector.load %arg9[%c0_17, %c0_18] : memref<8x128xf32, #tpu.memory_space<vmem>>, vector<8x128xf32>
      %c0_19 = arith.constant 0 : index
      %c0_20 = arith.constant 0 : index
      %20 = vector.load %arg6[%c0_19, %c0_20] : memref<1x128xf32, #tpu.memory_space<vmem>>, vector<1x128xf32>
      %21 = vector.broadcast %20 : vector<1x128xf32> to vector<8x128xf32>
      %22 = arith.addf %19, %21 : vector<8x128xf32>
      %cst_21 = arith.constant 0.000000e+00 : f32
      %23 = vector.broadcast %cst_21 : f32 to vector<8x128xf32>
      %24 = arith.select %18, %22, %23 : vector<8x128xi1>, vector<8x128xf32>
      %c0_22 = arith.constant 0 : index
      %c0_23 = arith.constant 0 : index
      %25 = vector.load %arg8[%c0_22, %c0_23] : memref<8x128xf32, #tpu.memory_space<vmem>>, vector<8x128xf32>
      tpu.vector_store %arg8[%c0_22, %c0_23], %24 {strides = array<i32>} : memref<8x128xf32, #tpu.memory_space<vmem>>, vector<8x128xf32>,
    } else {
    }
    return
  }
  func.func @transform_0(%arg0: i32, %arg1: i32, %arg2: i32) -> (i32, i32) {
    %c0_i32 = arith.constant 0 : i32
    return %arg0, %arg2 : i32, i32
  }
  func.func @transform_1(%arg0: i32, %arg1: i32, %arg2: i32) -> (i32, i32) {
    %c0_i32 = arith.constant 0 : i32
    return %arg2, %arg1 : i32, i32
  }
  func.func @transform_2(%arg0: i32, %arg1: i32, %arg2: i32) -> (i32, i32) {
    %c0_i32 = arith.constant 0 : i32
    return %arg2, %arg1 : i32, i32
  }
  func.func @transform_3(%arg0: i32, %arg1: i32, %arg2: i32) -> (i32, i32) {
    %c0_i32 = arith.constant 0 : i32
    %c0_i32_0 = arith.constant 0 : i32
    return %c0_i32, %arg1 : i32, i32
  }
  func.func @transform_4(%arg0: i32, %arg1: i32, %arg2: i32) -> (i32, i32) {
    %c0_i32 = arith.constant 0 : i32
    %c0_i32_0 = arith.constant 0 : i32
    return %c0_i32, %arg1 : i32, i32
  }
  func.func @transform_5(%arg0: i32, %arg1: i32, %arg2: i32) -> (i32, i32) {
    %c0_i32 = arith.constant 0 : i32
    return %arg0, %arg1 : i32, i32
  }
}

</mosaic_0001>

<llo_original>
// kernel: neg.1
$region0: #{neg.1}
  #allocation0 [shape = 's32[1]{0}', space=sflag, size = 0x4, scoped, tag = 'scoped memory for neg.1']
  %s0 = inlined_call_operand.vmem [shape: f32[32], index: 0, kind: input, shape index: {}]
  %s1 = inlined_call_operand.vmem [shape: f32[32], index: 1, kind: output, shape index: {}]
  %v2 = vld [vmem:[%s0] sm:$0x1]
  %3 = xla_tuple %v2
  %4 = xla_tuple %3
  %v5 = vxor.u32 %v2, 2147483648
  %6 = xla_tuple %v5
  %7 = vst [vmem:[%s1] sm:$0x1] %v5

// kernel: pathed_linear.1
$region0: #{pathed_linear.1}
  #allocation0 [shape = 'u32[]', space=smem, size = 0x4, offset = 0x4, fixed_abs, tag = 'smem constant byte address 0x4 - core index']
  #allocation1 [shape = 'u32[144,128]{1,0:T(1,128)}', space=vmem, size = 0x12000, scoped, tag = 'internal scratch']
  #allocation2 [shape = 'f32[8,128]{1,0:T(8,128)}', space=vmem, size = 0x1000, scoped, tag = 'scratch operand']
  #allocation3 [shape = 'f32[8,128]{1,0:T(8,128)}', space=vmem, size = 0x1000, scoped, tag = 'scratch operand']
  %s0 = inlined_call_operand.vmem [shape: f32[8,128], index: 0, kind: input, shape index: {}]
  %s1 = inlined_call_operand.vmem [shape: f32[128,128], index: 1, kind: input, shape index: {}]
  %s2 = inlined_call_operand.vmem [shape: f32[128,128], index: 2, kind: input, shape index: {}]
  %s3 = inlined_call_operand.vmem [shape: f32[1,128], index: 3, kind: input, shape index: {}]
  %s4 = inlined_call_operand.vmem [shape: f32[1,128], index: 4, kind: input, shape index: {}]
  %s5 = inlined_call_operand.hbm [shape: f32[8,128], index: 5, kind: output, shape index: {}]
  %s6 = sld [smem:[#allocation0]]
  $region42: #{pathed_linear.1} parent=0
    _
  %s8 = ssub.s32 1, %s6
  %s9 = scalar_select 0, %s8, %s6
  $region1: #{pathed_linear.1} parent=0
    #allocation4 [shape = 'u8[4096]{0}', space=vmem, size = 0x1000, scoped, tag = 'output window, operand 0, single buffered']
    #allocation5 [shape = 's32[1]{0}', space=sflag, size = 0x4, scoped, tag = 'scoped memory for pathed_linear.1']
    %10 = vsyncpa [#allocation5], 0
    // Predicated region
    $region2: #{pathed_linear.1} parent=1 // pred_check
      _
    $region3: #{pathed_linear.1} parent=1 // pred_check_branch
      %12 = sbr.rel (0) target = $region5
    $region4: #{pathed_linear.1} parent=1 // pred_region
      _
    $region5: #{pathed_linear.1} parent=1 // pred_fallthru
      _
    // Predicated region
    $region6: #{pathed_linear.1} parent=1 // pred_check
      _
    $region7: #{pathed_linear.1} parent=1 // pred_check_branch
      %14 = sbr.rel (0) target = $region9
    $region8: #{pathed_linear.1} parent=1 // pred_region
      _
    $region9: #{pathed_linear.1} parent=1 // pred_fallthru
      _
    // Predicated region
    $region10: #{pathed_linear.1} parent=1 // pred_check
      _
    $region11: #{pathed_linear.1} parent=1 // pred_check_branch
      %16 = sbr.rel (0) target = $region13
    $region12: #{pathed_linear.1} parent=1 // pred_region
      _
    $region13: #{pathed_linear.1} parent=1 // pred_fallthru
      _
    // Predicated region
    $region14: #{pathed_linear.1} parent=1 // pred_check
      _
    $region15: #{pathed_linear.1} parent=1 // pred_check_branch
      %18 = sbr.rel (0) target = $region17
    $region16: #{pathed_linear.1} parent=1 // pred_region
      _
    $region17: #{pathed_linear.1} parent=1 // pred_fallthru
      _
    // Predicated region
    $region18: #{pathed_linear.1} parent=1 // pred_check
      _
    $region19: #{pathed_linear.1} parent=1 // pred_check_branch
      %20 = sbr.rel (0) target = $region21
    $region20: #{pathed_linear.1} parent=1 // pred_region
      _
    $region21: #{pathed_linear.1} parent=1 // pred_fallthru
      _
    %v21 = vld [vmem:[%s0] sm:$0xff]
    %v22 = vld [vmem:[%s1] sm:$0xff]
    %v23 = vld [vmem:[%s1 + $0x8] sm:$0xff]
    %v24 = vld [vmem:[%s1 + $0x10] sm:$0xff]
    %v25 = vld [vmem:[%s1 + $0x18] sm:$0xff]
    %v26 = vld [vmem:[%s1 + $0x20] sm:$0xff]
    %v27 = vld [vmem:[%s1 + $0x28] sm:$0xff]
    %v28 = vld [vmem:[%s1 + $0x30] sm:$0xff]
    %v29 = vld [vmem:[%s1 + $0x38] sm:$0xff]
    %v30 = vld [vmem:[%s1 + $0x40] sm:$0xff]
    %v31 = vld [vmem:[%s1 + $0x48] sm:$0xff]
    %v32 = vld [vmem:[%s1 + $0x50] sm:$0xff]
    %v33 = vld [vmem:[%s1 + $0x58] sm:$0xff]
    %v34 = vld [vmem:[%s1 + $0x60] sm:$0xff]
    %v35 = vld [vmem:[%s1 + $0x68] sm:$0xff]
    %v36 = vld [vmem:[%s1 + $0x70] sm:$0xff]
    %v37 = vld [vmem:[%s1 + $0x78] sm:$0xff]
    %38 = vmatprep.subr.mxu0 0.0
    %39 = vmatpush1.msra.mxu0 %v22
    %40 = vmatprep.subr.mxu0 0.0
    %41 = vmatpush1.msra.mxu0 %v23
    %42 = vmatprep.subr.mxu0 0.0
    %43 = vmatpush1.msra.mxu0 %v24
    %44 = vmatprep.subr.mxu0 0.0
    %45 = vmatpush1.msra.mxu0 %v25
    %46 = vmatprep.subr.mxu0 0.0
    %47 = vmatpush1.msra.mxu0 %v26
    %48 = vmatprep.subr.mxu0 0.0
    %49 = vmatpush1.msra.mxu0 %v27
    %50 = vmatprep.subr.mxu0 0.0
    %51 = vmatpush1.msra.mxu0 %v28
    %52 = vmatprep.subr.mxu0 0.0
    %53 = vmatpush1.msra.mxu0 %v29
    %54 = vmatprep.subr.mxu0 0.0
    %55 = vmatpush1.msra.mxu0 %v30
    %56 = vmatprep.subr.mxu0 0.0
    %57 = vmatpush1.msra.mxu0 %v31
    %58 = vmatprep.subr.mxu0 0.0
    %59 = vmatpush1.msra.mxu0 %v32
    %60 = vmatprep.subr.mxu0 0.0
    %61 = vmatpush1.msra.mxu0 %v33
    %62 = vmatprep.subr.mxu0 0.0
    %63 = vmatpush1.msra.mxu0 %v34
    %64 = vmatprep.subr.mxu0 0.0
    %65 = vmatpush1.msra.mxu0 %v35
    %66 = vmatprep.subr.mxu0 0.0
    %67 = vmatpush1.msra.mxu0 %v36
    %68 = vmatprep.subr.mxu0 0.0
    %69 = vmatpush1.msra.mxu0 %v37
    %70 = vmatprep.subr.mxu0 0.0
    %71 = vmatpush1.msra.mxu0 0.0
    %72 = vmatprep.subr.mxu0 0.0
    %73 = vmatpush1.msra.mxu0 0.0
    %74 = vmatprep.subr.mxu0 0.0
    %75 = vmatpush1.msra.mxu0 0.0
    %76 = vmatprep.subr.mxu0 0.0
    %77 = vmatpush1.msra.mxu0 0.0
    %78 = vmatprep.subr.mxu0 0.0
    %79 = vmatpush1.msra.mxu0 0.0
    %80 = vmatprep.subr.mxu0 0.0
    %81 = vmatpush1.msra.mxu0 0.0
    %82 = vmatprep.subr.mxu0 0.0
    %83 = vmatpush1.msra.mxu0 0.0
    %84 = vmatprep.subr.mxu0 0.0
    %85 = vmatpush1.msra.mxu0 0.0
    %86 = vmatprep.subr.mxu0 0.0
    %87 = vmatpush1.msra.mxu0 0.0
    %88 = vmatprep.subr.mxu0 0.0
    %89 = vmatpush1.msra.mxu0 0.0
    %90 = vmatprep.subr.mxu0 0.0
    %91 = vmatpush1.msra.mxu0 0.0
    %92 = vmatprep.subr.mxu0 0.0
    %93 = vmatpush1.msra.mxu0 0.0
    %94 = vmatprep.subr.mxu0 0.0
    %95 = vmatpush1.msra.mxu0 0.0
    %96 = vmatprep.subr.mxu0 0.0
    %97 = vmatpush1.msra.mxu0 0.0
    %98 = vmatprep.subr.mxu0 0.0
    %99 = vmatpush1.msra.mxu0 0.0
    %100 = vmatprep.subr.mxu0 0.0
    %101 = vmatpush1.msra.mxu0 0.0
    %102 = vmatprep.mubr.f32.mxu0 0.0
    %103 = vmatmul.mubr.f32.gmra.mrb[0].mxu0 %v21
    %v104 = vpop.f32.mrb[0].mxu0
    %v105 = vadd.f32 0.0, %v104
    %v106 = vpop.f32.mrb[0].mxu0
    %107 = vdwg.mxu0
    %v108 = vld [vmem:[%s2] sm:$0xff]
    %v109 = vld [vmem:[%s2 + $0x8] sm:$0xff]
    %v110 = vld [vmem:[%s2 + $0x10] sm:$0xff]
    %v111 = vld [vmem:[%s2 + $0x18] sm:$0xff]
    %v112 = vld [vmem:[%s2 + $0x20] sm:$0xff]
    %v113 = vld [vmem:[%s2 + $0x28] sm:$0xff]
    %v114 = vld [vmem:[%s2 + $0x30] sm:$0xff]
    %v115 = vld [vmem:[%s2 + $0x38] sm:$0xff]
    %v116 = vld [vmem:[%s2 + $0x40] sm:$0xff]
    %v117 = vld [vmem:[%s2 + $0x48] sm:$0xff]
    %v118 = vld [vmem:[%s2 + $0x50] sm:$0xff]
    %v119 = vld [vmem:[%s2 + $0x58] sm:$0xff]
    %v120 = vld [vmem:[%s2 + $0x60] sm:$0xff]
    %v121 = vld [vmem:[%s2 + $0x68] sm:$0xff]
    %v122 = vld [vmem:[%s2 + $0x70] sm:$0xff]
    %v123 = vld [vmem:[%s2 + $0x78] sm:$0xff]
    %124 = vmatprep.subr.mxu0 0.0
    %125 = vmatpush1.msra.mxu0 %v108
    %126 = vmatprep.subr.mxu0 0.0
    %127 = vmatpush1.msra.mxu0 %v109
    %128 = vmatprep.subr.mxu0 0.0
    %129 = vmatpush1.msra.mxu0 %v110
    %130 = vmatprep.subr.mxu0 0.0
    %131 = vmatpush1.msra.mxu0 %v111
    %132 = vmatprep.subr.mxu0 0.0
    %133 = vmatpush1.msra.mxu0 %v112
    %134 = vmatprep.subr.mxu0 0.0
    %135 = vmatpush1.msra.mxu0 %v113
    %136 = vmatprep.subr.mxu0 0.0
    %137 = vmatpush1.msra.mxu0 %v114
    %138 = vmatprep.subr.mxu0 0.0
    %139 = vmatpush1.msra.mxu0 %v115
    %140 = vmatprep.subr.mxu0 0.0
    %141 = vmatpush1.msra.mxu0 %v116
    %142 = vmatprep.subr.mxu0 0.0
    %143 = vmatpush1.msra.mxu0 %v117
    %144 = vmatprep.subr.mxu0 0.0
    %145 = vmatpush1.msra.mxu0 %v118
    %146 = vmatprep.subr.mxu0 0.0
    %147 = vmatpush1.msra.mxu0 %v119
    %148 = vmatprep.subr.mxu0 0.0
    %149 = vmatpush1.msra.mxu0 %v120
    %150 = vmatprep.subr.mxu0 0.0
    %151 = vmatpush1.msra.mxu0 %v121
    %152 = vmatprep.subr.mxu0 0.0
    %153 = vmatpush1.msra.mxu0 %v122
    %154 = vmatprep.subr.mxu0 0.0
    %155 = vmatpush1.msra.mxu0 %v123
    %156 = vmatprep.subr.mxu0 0.0
    %157 = vmatpush1.msra.mxu0 0.0
    %158 = vmatprep.subr.mxu0 0.0
    %159 = vmatpush1.msra.mxu0 0.0
    %160 = vmatprep.subr.mxu0 0.0
    %161 = vmatpush1.msra.mxu0 0.0
    %162 = vmatprep.subr.mxu0 0.0
    %163 = vmatpush1.msra.mxu0 0.0
    %164 = vmatprep.subr.mxu0 0.0
    %165 = vmatpush1.msra.mxu0 0.0
    %166 = vmatprep.subr.mxu0 0.0
    %167 = vmatpush1.msra.mxu0 0.0
    %168 = vmatprep.subr.mxu0 0.0
    %169 = vmatpush1.msra.mxu0 0.0
    %170 = vmatprep.subr.mxu0 0.0
    %171 = vmatpush1.msra.mxu0 0.0
    %172 = vmatprep.subr.mxu0 0.0
    %173 = vmatpush1.msra.mxu0 0.0
    %174 = vmatprep.subr.mxu0 0.0
    %175 = vmatpush1.msra.mxu0 0.0
    %176 = vmatprep.subr.mxu0 0.0
    %177 = vmatpush1.msra.mxu0 0.0
    %178 = vmatprep.subr.mxu0 0.0
    %179 = vmatpush1.msra.mxu0 0.0
    %180 = vmatprep.subr.mxu0 0.0
    %181 = vmatpush1.msra.mxu0 0.0
    %182 = vmatprep.subr.mxu0 0.0
    %183 = vmatpush1.msra.mxu0 0.0
    %184 = vmatprep.subr.mxu0 0.0
    %185 = vmatpush1.msra.mxu0 0.0
    %186 = vmatprep.subr.mxu0 0.0
    %187 = vmatpush1.msra.mxu0 0.0
    %188 = vmatprep.mubr.f32.mxu0 0.0
    %189 = vmatmul.mubr.f32.gmra.mrb[0].mxu0 %v21
    %v190 = vpop.f32.mrb[0].mxu0
    %v191 = vadd.f32 0.0, %v190
    %v192 = vpop.f32.mrb[0].mxu0
    %193 = vdwg.mxu0
    %p194 = scmp.eq.s32.totalorder 0, 0
    // Predicated region
    $region22: #{pathed_linear.1} parent=1 // pred_check
      %p195 = pneg %p194
    $region23: #{pathed_linear.1} parent=1 // pred_check_branch
      %197 = sbr.rel (%p195) target = $region25
    $region24: #{pathed_linear.1} parent=1 // pred_region
      %198 = vst [vmem:[#allocation2] sm:$0xff] %v105
      %199 = vst [vmem:[#allocation3] sm:$0xff] %v191
    $region25: #{pathed_linear.1} parent=1 // pred_fallthru
      _
    %p200 = scmp.ne.s32.totalorder 0, 0
    // Predicated region
    $region26: #{pathed_linear.1} parent=1 // pred_check
      %p201 = pneg %p200
    $region27: #{pathed_linear.1} parent=1 // pred_check_branch
      %203 = sbr.rel (%p201) target = $region29
    $region28: #{pathed_linear.1} parent=1 // pred_region
      %v204 = vld [vmem:[#allocation2] sm:$0xff]
      %v205 = vadd.f32 %v204, %v105
      %206 = vst [vmem:[#allocation2] sm:$0xff] %v205
      %v207 = vld [vmem:[#allocation3] sm:$0xff]
      %v208 = vadd.f32 %v207, %v191
      %209 = vst [vmem:[#allocation3] sm:$0xff] %v208
    $region29: #{pathed_linear.1} parent=1 // pred_fallthru
      _
    // Predicated region
    $region30: #{pathed_linear.1} parent=1 // pred_check
      %p210 = pneg %p194
    $region31: #{pathed_linear.1} parent=1 // pred_check_branch
      %212 = sbr.rel (%p210) target = $region33
    $region32: #{pathed_linear.1} parent=1 // pred_region
      %v213 = vld [vmem:[#allocation3] sm:$0xff]
      %v214 = vld [vmem:[%s4] sm:$0x1]
      %v216 = vlaneseq
      %v217 = vshrl.u32 %v216, 7
      %v218 = vsub.s32 0, %v217
      %v219 = vrot.slane %v214, %v218
      %vm221 = vcmp.gt.f32.partialorder %v213, %v219
      %v222 = vld [vmem:[#allocation2] sm:$0xff]
      %v223 = vld [vmem:[%s3] sm:$0x1]
      %v225 = vlaneseq
      %v226 = vshrl.u32 %v225, 7
      %v227 = vsub.s32 0, %v226
      %v228 = vrot.slane %v223, %v227
      %v230 = vadd.f32 %v222, %v228
      %v231 = vsel %vm221, %v230, 0.0
      %232 = vst [vmem:[#allocation4] sm:$0xff] %v231
    $region33: #{pathed_linear.1} parent=1 // pred_fallthru
      _
    // Predicated region
    $region34: #{pathed_linear.1} parent=1 // pred_check
      _
    $region35: #{pathed_linear.1} parent=1 // pred_check_branch
      %234 = sbr.rel (0) target = $region37
    $region36: #{pathed_linear.1} parent=1 // pred_region
      %s236 = ssub.s32 128, 128
      %237 = vsyncadd [#allocation5], %s236
      %s239 = sshll.u32 [#allocation4], 4
      %s240 = int_to_ptr.vmem [resolvable:$true] %s239
      %242 = dma.vmem_to_hbm [thread:$0]  %s240, 128, %s5, [#allocation5]
    $region37: #{pathed_linear.1} parent=1 // pred_fallthru
      _
    // Predicated region
    $region38: #{pathed_linear.1} parent=1 // pred_check
      _
    $region39: #{pathed_linear.1} parent=1 // pred_check_branch
      %244 = sbr.rel (0) target = $region41
    $region40: #{pathed_linear.1} parent=1 // pred_region
      %245 = dma.done [#allocation5], 128
    $region41: #{pathed_linear.1} parent=1 // pred_fallthru
      _
    %246 = vsyncpa [#allocation5], 1

</llo_original>
